<compile_context>
chip_gen: v7x
topology: tpu7x:2x2x1
jax: 0.10.0
libtpu: 0.0.40
codegen_flags: <defaults>
</compile_context>

<pallas_src>
import jax
import jax.numpy as jnp
from jax.experimental import pallas as pl
from jax.experimental.pallas import tpu as pltpu


def _round_up(x: int, n: int) -> int:
    return ((x + n - 1) // n) * n


def _vmem_capacity_bytes() -> int:
    try:
        return int(pltpu.get_tpu_info().vmem_capacity_bytes)
    except Exception:
        return 64 * 1024 * 1024   # conservative (v7x per-TC) fallback


def _num_tensorcores() -> int:
    try:
        kind = jax.devices()[0].device_kind.lower()
    except Exception:
        return 1
    return 2 if ("v7" in kind or "7x" in kind) else 1


def _vmem_estimate(tm, tn, tff, dm_pad, cb, ob, use_acc):
    """Rough VMEM footprint: double-buffered blocks + intermediate h + acc."""
    return (2 * tm * dm_pad * cb            # x blocks
            + 2 * dm_pad * tff * cb         # W1 column blocks
            + 2 * tff * tn * cb             # W2 blocks
            + 2 * tff * 4 + 2 * tn * 4      # bias blocks
            + 2 * tm * tn * ob              # output blocks
            + (tm * tn * 4 if use_acc else 0)   # f32 accumulator scratch
            + tm * tff * (4 + cb))          # intermediate h (f32 + cast copy)


# ---------------------------------------------------------------------------
# Kernels. Grid = (row tile i, output tile n, reduction tile k) — k innermost.
# ---------------------------------------------------------------------------
def _ffn_kernel_direct(x_ref, w1_ref, b1_ref, w2_ref, b2_ref, o_ref):
    # o_ref is f32 and doubles as the accumulator (resident across k).
    k = pl.program_id(2)

    @pl.when(k == 0)
    def _():
        o_ref[...] = jnp.zeros_like(o_ref)

    h = jnp.dot(x_ref[...], w1_ref[...], preferred_element_type=jnp.float32)
    h = jnp.maximum(h + b1_ref[...], 0.0).astype(w2_ref.dtype)
    o_ref[...] += jnp.dot(h, w2_ref[...], preferred_element_type=jnp.float32)

    @pl.when(k == pl.num_programs(2) - 1)
    def _():
        o_ref[...] += b2_ref[...]


def _ffn_kernel_acc(x_ref, w1_ref, b1_ref, w2_ref, b2_ref, o_ref, acc_ref):
    # Non-f32 output: accumulate in f32 scratch, cast on the last k step.
    k = pl.program_id(2)

    @pl.when(k == 0)
    def _():
        acc_ref[...] = jnp.zeros_like(acc_ref)

    h = jnp.dot(x_ref[...], w1_ref[...], preferred_element_type=jnp.float32)
    h = jnp.maximum(h + b1_ref[...], 0.0).astype(w2_ref.dtype)
    acc_ref[...] += jnp.dot(h, w2_ref[...], preferred_element_type=jnp.float32)

    @pl.when(k == pl.num_programs(2) - 1)
    def _():
        o_ref[...] = (acc_ref[...] + b2_ref[...]).astype(o_ref.dtype)


# ---------------------------------------------------------------------------
# Prepare-once / apply-many wrapper.
# ---------------------------------------------------------------------------
def make_positionwise_feed_forward(w1, b1, w2, b2, *, tm=512, tff=None, tn=None,
                                   compute_dtype=jnp.bfloat16):
    """Pad + cast the FFN weights once and return apply(x) implementing
    max(0, x @ W1 + b1) @ W2 + b2 (eval-mode dropout = identity).

    w1: (dim_model, dim_ff), b1: (dim_ff,), w2: (dim_ff, dim_model), b2: (dim_model,)
    (weights pre-transposed relative to nn.Linear storage).
    """
    dim_model, dim_ff = w1.shape
    assert w2.shape == (dim_ff, dim_model)
    cdt = jnp.dtype(compute_dtype)
    cb = cdt.itemsize

    vmem_cap = _vmem_capacity_bytes()
    n_tc = _num_tensorcores()
    row_align = 16 if cb < 4 else 8

    # Lane alignment: 256 fills the v6e/v7x 2x256 MXU; 128 is the hard floor.
    dm_align = 256 if dim_model > 128 else 128
    ff_align = 256 if dim_ff > 128 else 128
    dm_base = _round_up(dim_model, dm_align)

    # --- initial tile choices ---
    if tff is None:
        tff = 1024 if vmem_cap >= (96 << 20) else 512
    tff = max(ff_align, min(_round_up(tff, ff_align), _round_up(dim_ff, ff_align)))

    if tn is None:
        tn = 2048
    tn = max(128, min(_round_up(tn, dm_align), dm_base))
    if tn >= dm_base:
        tn = dm_base

    tm_budget = _round_up(max(row_align, tm), row_align)

    # --- shrink tiles until the (worst-case tm) estimate fits VMEM ---
    budget = int(0.85 * vmem_cap)
    for _ in range(32):
        est = _vmem_estimate(tm_budget, tn, tff, _round_up(dm_base, tn), cb, 4, False)
        if est + (2 << 20) <= budget:
            break
        if tff > 256:
            tff = max(256, tff // 2)
        elif tn > 512:
            tn = max(512, ((tn // 2) // 128) * 128)
        elif tm_budget > 256:
            tm_budget = max(256, tm_budget // 2)
        elif tff > 128:
            tff = 128
        elif tn > 128:
            tn = max(128, ((tn // 2) // 128) * 128)
        elif tm_budget > row_align:
            tm_budget = max(row_align, tm_budget // 2)
        else:
            break

    dm_pad = _round_up(dm_base, tn)
    dff_pad = _round_up(dim_ff, tff)

    # --- pad + cast the weights ONCE (no per-call weight traffic) ---
    if w1.shape != (dm_pad, dff_pad):
        w1 = jnp.pad(w1, ((0, dm_pad - dim_model), (0, dff_pad - dim_ff)))
    w1p = w1.astype(cdt)
    if b1.shape[0] != dff_pad:
        b1 = jnp.pad(b1, (0, dff_pad - dim_ff))
    b1p = b1.reshape(1, dff_pad).astype(jnp.float32)
    if w2.shape != (dff_pad, dm_pad):
        w2 = jnp.pad(w2, ((0, dff_pad - dim_ff), (0, dm_pad - dim_model)))
    w2p = w2.astype(cdt)
    if b2.shape[0] != dm_pad:
        b2 = jnp.pad(b2, (0, dm_pad - dim_model))
    b2p = b2.reshape(1, dm_pad).astype(jnp.float32)

    tm_max = tm_budget

    def apply(x):
        orig_shape = x.shape
        assert orig_shape[-1] == dim_model
        out_dtype = x.dtype
        x2d = x.reshape(-1, dim_model)
        m = x2d.shape[0]

        # Row tile: as large as allowed, rounded for bf16 sublane packing.
        tm_i = _round_up(max(row_align, min(tm_max, _round_up(m, row_align))),
                         row_align)
        # Keep >= 2 row blocks on multi-TensorCore chips so both cores get work.
        if n_tc >= 2 and m > 2 * row_align and m <= tm_i:
            tm_i = _round_up(-(-m // 2), row_align)
        m_pad = _round_up(m, tm_i)

        if (m_pad, dm_pad) != x2d.shape:
            xp = jnp.pad(x2d, ((0, m_pad - m), (0, dm_pad - dim_model)))
        else:
            xp = x2d
        xp = xp.astype(cdt)

        grid = (m_pad // tm_i, dm_pad // tn, dff_pad // tff)
        n_i, n_n, n_k = grid

        direct = jnp.dtype(out_dtype) == jnp.float32
        kernel = _ffn_kernel_direct if direct else _ffn_kernel_acc
        scratch = [] if direct else [pltpu.VMEM((tm_i, tn), jnp.float32)]

        ob = jnp.dtype(out_dtype).itemsize
        est = _vmem_estimate(tm_i, tn, tff, dm_pad, cb, ob, not direct)
        vmem_limit = int(min(int(0.85 * vmem_cap),
                             max(32 << 20, int(est * 1.5) + (2 << 20))))

        # Honest byte accounting: W1 re-streamed per (row, out) tile; W2 per row tile.
        cost = pl.CostEstimate(
            flops=int(4 * m_pad * dm_pad * dff_pad),
            transcendentals=0,
            bytes_accessed=int(m_pad * dm_pad * cb
                               + n_i * n_n * dm_pad * dff_pad * cb
                               + n_i * dff_pad * dm_pad * cb
                               + dff_pad * 4 + dm_pad * 4
                               + m_pad * dm_pad * ob),
        )

        out = pl.pallas_call(
            kernel,
            out_shape=jax.ShapeDtypeStruct((m_pad, dm_pad), out_dtype),
            grid_spec=pltpu.PrefetchScalarGridSpec(
                num_scalar_prefetch=0,
                grid=grid,
                in_specs=[
                    pl.BlockSpec((tm_i, dm_pad), lambda i, n, k: (i, 0)),   # x rows
                    pl.BlockSpec((dm_pad, tff), lambda i, n, k: (0, k)),    # W1 col block
                    pl.BlockSpec((1, tff), lambda i, n, k: (0, k)),         # b1 slice
                    pl.BlockSpec((tff, tn), lambda i, n, k: (k, n)),        # W2 block
                    pl.BlockSpec((1, tn), lambda i, n, k: (0, n)),          # b2 slice
                ],
                out_specs=pl.BlockSpec((tm_i, tn), lambda i, n, k: (i, n)),
                scratch_shapes=scratch,
            ),
            compiler_params=pltpu.CompilerParams(
                dimension_semantics=("parallel", "parallel", "arbitrary"),
                vmem_limit_bytes=vmem_limit,
            ),
            cost_estimate=cost,
        )(xp, w1p, b1p, w2p, b2p)

        return out[:m, :dim_model].reshape(orig_shape)

    return apply


def positionwise_feed_forward(x, w1, b1, w2, b2, **kwargs):
    """One-shot convenience wrapper (prefer make_positionwise_feed_forward for
    repeated calls, so weight pad/cast happens once)."""
    return make_positionwise_feed_forward(w1, b1, w2, b2, **kwargs)(x)


if __name__ == "__main__":
    # Small shapes consistent with the module: tokens of width dim_model.
    batch, seq, dim_model, dim_ff = 2, 8, 32, 64

    key = jax.random.PRNGKey(0)
    kx, kw1, kb1, kw2, kb2 = jax.random.split(key, 5)

    x = jax.random.normal(kx, (batch, seq, dim_model), dtype=jnp.float32)
    # Synthetic parameters; shapes match nn.Linear weights (pre-transposed).
    w1 = jax.random.normal(kw1, (dim_model, dim_ff), dtype=jnp.float32) * 0.1
    b1 = jax.random.normal(kb1, (dim_ff,), dtype=jnp.float32) * 0.1
    w2 = jax.random.normal(kw2, (dim_ff, dim_model), dtype=jnp.float32) * 0.1
    b2 = jax.random.normal(kb2, (dim_model,), dtype=jnp.float32) * 0.1

    ffn = jax.jit(make_positionwise_feed_forward(w1, b1, w2, b2))
    y = jax.block_until_ready(ffn(x))
    assert y.shape == x.shape

    # Reference matching the kernel's precision (bf16 matmul inputs, f32 accumulation).
    xb = x.reshape(-1, dim_model).astype(jnp.bfloat16)
    h_ref = jnp.maximum(
        jnp.dot(xb, w1.astype(jnp.bfloat16), preferred_element_type=jnp.float32) + b1,
        0.0).astype(jnp.bfloat16)
    ref_bf16 = (jnp.dot(h_ref, w2.astype(jnp.bfloat16),
                        preferred_element_type=jnp.float32) + b2)
    ref_bf16 = ref_bf16.astype(x.dtype).reshape(x.shape)
    assert jnp.allclose(y, ref_bf16, atol=2e-3, rtol=2e-3), "mismatch vs bf16-matched reference"

    # Loose check vs the pure-f32 PyTorch-equivalent reference (dropout = identity in eval).
    ref_f32 = jnp.maximum(x @ w1 + b1, 0.0) @ w2 + b2
    assert jnp.allclose(y, ref_f32, atol=5e-2, rtol=5e-2), "mismatch vs f32 reference"

    print("KERNEL_OK")
</pallas_src>

<mosaic_0001>
module attributes {stable_mosaic.version = 11 : i64} {
  func.func @_ffn_kernel_direct(%arg0: i32, %arg1: i32, %arg2: i32, %arg3: memref<16x128xbf16, #tpu.memory_space<vmem>>, %arg4: memref<128x128xbf16, #tpu.memory_space<vmem>>, %arg5: memref<1x128xf32, #tpu.memory_space<vmem>>, %arg6: memref<128x128xbf16, #tpu.memory_space<vmem>>, %arg7: memref<1x128xf32, #tpu.memory_space<vmem>>, %arg8: memref<16x128xf32, #tpu.memory_space<vmem>>) attributes {dimension_semantics = [#tpu.dimension_semantics<parallel>, #tpu.dimension_semantics<parallel>, #tpu.dimension_semantics<arbitrary>], iteration_bounds = array<i64: 1, 1, 1>, scalar_prefetch = 0 : i64, scratch_operands = 0 : i64, tpu.core_type = #tpu.core_type<tc>, window_params = [{transform_indices = @transform_0, window_bounds = array<i64: 16, 128>}, {transform_indices = @transform_1, window_bounds = array<i64: 128, 128>}, {transform_indices = @transform_2, window_bounds = array<i64: 1, 128>}, {transform_indices = @transform_3, window_bounds = array<i64: 128, 128>}, {transform_indices = @transform_4, window_bounds = array<i64: 1, 128>}, {transform_indices = @transform_5, window_bounds = array<i64: 16, 128>}]} {
    %c0_i32 = arith.constant 0 : i32
    %0 = arith.cmpi eq, %arg2, %c0_i32 : i32
    %1 = arith.extui %0 : i1 to i32
    %c0_i32_0 = arith.constant 0 : i32
    %2 = arith.cmpi ne, %1, %c0_i32_0 : i32
    scf.if %2 {
      %cst_16 = arith.constant 0.000000e+00 : f32
      %20 = vector.broadcast %cst_16 : f32 to vector<16x128xf32>
      %c0_17 = arith.constant 0 : index
      %c0_18 = arith.constant 0 : index
      %21 = vector.load %arg8[%c0_17, %c0_18] : memref<16x128xf32, #tpu.memory_space<vmem>>, vector<16x128xf32>
      tpu.vector_store %arg8[%c0_17, %c0_18], %20 {strides = array<i32>} : memref<16x128xf32, #tpu.memory_space<vmem>>, vector<16x128xf32>,
    } else {
    }
    %c0 = arith.constant 0 : index
    %c0_1 = arith.constant 0 : index
    %3 = vector.load %arg3[%c0, %c0_1] : memref<16x128xbf16, #tpu.memory_space<vmem>>, vector<16x128xbf16>
    %c0_2 = arith.constant 0 : index
    %c0_3 = arith.constant 0 : index
    %4 = vector.load %arg4[%c0_2, %c0_3] : memref<128x128xbf16, #tpu.memory_space<vmem>>, vector<128x128xbf16>
    %cst = arith.constant dense<0.000000e+00> : vector<16x128xf32>
    %5 = tpu.matmul %3, %4, %cst {dimension_numbers = #tpu.dot_dimension_numbers<[1], [0], [0], [1], [0, 0, 1, 1], [], []>} : vector<16x128xbf16>, vector<128x128xbf16>, vector<16x128xf32> -> vector<16x128xf32>
    %c0_4 = arith.constant 0 : index
    %c0_5 = arith.constant 0 : index
    %6 = vector.load %arg5[%c0_4, %c0_5] : memref<1x128xf32, #tpu.memory_space<vmem>>, vector<1x128xf32>
    %7 = vector.broadcast %6 : vector<1x128xf32> to vector<16x128xf32>
    %8 = arith.addf %5, %7 : vector<16x128xf32>
    %cst_6 = arith.constant 0.000000e+00 : f32
    %9 = vector.broadcast %cst_6 : f32 to vector<16x128xf32>
    %10 = arith.maximumf %8, %9 : vector<16x128xf32>
    %11 = arith.truncf %10 : vector<16x128xf32> to vector<16x128xbf16>
    %c0_7 = arith.constant 0 : index
    %c0_8 = arith.constant 0 : index
    %12 = vector.load %arg8[%c0_7, %c0_8] : memref<16x128xf32, #tpu.memory_space<vmem>>, vector<16x128xf32>
    %c0_9 = arith.constant 0 : index
    %c0_10 = arith.constant 0 : index
    %13 = vector.load %arg6[%c0_9, %c0_10] : memref<128x128xbf16, #tpu.memory_space<vmem>>, vector<128x128xbf16>
    %cst_11 = arith.constant dense<0.000000e+00> : vector<16x128xf32>
    %14 = tpu.matmul %11, %13, %cst_11 {dimension_numbers = #tpu.dot_dimension_numbers<[1], [0], [0], [1], [0, 0, 1, 1], [], []>} : vector<16x128xbf16>, vector<128x128xbf16>, vector<16x128xf32> -> vector<16x128xf32>
    %15 = arith.addf %12, %14 : vector<16x128xf32>
    %c0_12 = arith.constant 0 : index
    %c0_13 = arith.constant 0 : index
    %16 = vector.load %arg8[%c0_12, %c0_13] : memref<16x128xf32, #tpu.memory_space<vmem>>, vector<16x128xf32>
    tpu.vector_store %arg8[%c0_12, %c0_13], %15 {strides = array<i32>} : memref<16x128xf32, #tpu.memory_space<vmem>>, vector<16x128xf32>,
    %c0_i32_14 = arith.constant 0 : i32
    %17 = arith.cmpi eq, %arg2, %c0_i32_14 : i32
    %18 = arith.extui %17 : i1 to i32
    %c0_i32_15 = arith.constant 0 : i32
    %19 = arith.cmpi ne, %18, %c0_i32_15 : i32
    scf.if %19 {
      %c0_16 = arith.constant 0 : index
      %c0_17 = arith.constant 0 : index
      %20 = vector.load %arg8[%c0_16, %c0_17] : memref<16x128xf32, #tpu.memory_space<vmem>>, vector<16x128xf32>
      %c0_18 = arith.constant 0 : index
      %c0_19 = arith.constant 0 : index
      %21 = vector.load %arg7[%c0_18, %c0_19] : memref<1x128xf32, #tpu.memory_space<vmem>>, vector<1x128xf32>
      %22 = vector.broadcast %21 : vector<1x128xf32> to vector<16x128xf32>
      %23 = arith.addf %20, %22 : vector<16x128xf32>
      %c0_20 = arith.constant 0 : index
      %c0_21 = arith.constant 0 : index
      %24 = vector.load %arg8[%c0_20, %c0_21] : memref<16x128xf32, #tpu.memory_space<vmem>>, vector<16x128xf32>
      tpu.vector_store %arg8[%c0_20, %c0_21], %23 {strides = array<i32>} : memref<16x128xf32, #tpu.memory_space<vmem>>, vector<16x128xf32>,
    } else {
    }
    return
  }
  func.func @transform_0(%arg0: i32, %arg1: i32, %arg2: i32) -> (i32, i32) {
    %c0_i32 = arith.constant 0 : i32
    %c0_i32_0 = arith.constant 0 : i32
    return %arg0, %c0_i32 : i32, i32
  }
  func.func @transform_1(%arg0: i32, %arg1: i32, %arg2: i32) -> (i32, i32) {
    %c0_i32 = arith.constant 0 : i32
    %c0_i32_0 = arith.constant 0 : i32
    return %c0_i32, %arg2 : i32, i32
  }
  func.func @transform_2(%arg0: i32, %arg1: i32, %arg2: i32) -> (i32, i32) {
    %c0_i32 = arith.constant 0 : i32
    %c0_i32_0 = arith.constant 0 : i32
    return %c0_i32, %arg2 : i32, i32
  }
  func.func @transform_3(%arg0: i32, %arg1: i32, %arg2: i32) -> (i32, i32) {
    %c0_i32 = arith.constant 0 : i32
    return %arg2, %arg1 : i32, i32
  }
  func.func @transform_4(%arg0: i32, %arg1: i32, %arg2: i32) -> (i32, i32) {
    %c0_i32 = arith.constant 0 : i32
    %c0_i32_0 = arith.constant 0 : i32
    return %c0_i32, %arg1 : i32, i32
  }
  func.func @transform_5(%arg0: i32, %arg1: i32, %arg2: i32) -> (i32, i32) {
    %c0_i32 = arith.constant 0 : i32
    return %arg0, %arg1 : i32, i32
  }
}

</mosaic_0001>

<llo_original>
// kernel: apply.1
$region0: #{apply.1}
  #allocation0 [shape = 'u32[]', space=smem, size = 0x4, offset = 0x4, fixed_abs, tag = 'smem constant byte address 0x4 - core index']
  #allocation1 [shape = 'u32[144,128]{1,0:T(1,128)}', space=vmem, size = 0x12000, scoped, tag = 'internal scratch']
  %s0 = inlined_call_operand.vmem [shape: bf16[16,128], index: 0, kind: input, shape index: {}]
  %s1 = inlined_call_operand.hbm [shape: bf16[128,128], index: 1, kind: input, shape index: {}]
  %s2 = inlined_call_operand.vmem [shape: f32[1,128], index: 2, kind: input, shape index: {}]
  %s3 = inlined_call_operand.vmem [shape: bf16[128,128], index: 3, kind: input, shape index: {}]
  %s4 = inlined_call_operand.vmem [shape: f32[1,128], index: 4, kind: input, shape index: {}]
  %s5 = inlined_call_operand.vmem [shape: f32[16,128], index: 5, kind: output, shape index: {}]
  %s6 = sld [smem:[#allocation0]]
  $region42: #{apply.1} parent=0
    _
  %s8 = ssub.s32 1, %s6
  %s9 = scalar_select 0, %s8, %s6
  $region1: #{apply.1} parent=0
    #allocation2 [shape = 'u8[32768]{0}', space=vmem, size = 0x8000, scoped, tag = 'input window, operand 1, single buffered']
    #allocation3 [shape = 's32[1]{0}', space=sflag, size = 0x4, scoped, tag = 'scoped memory for apply.1']
    %10 = vsyncpa [#allocation3], 0
    // Predicated region
    $region2: #{apply.1} parent=1 // pred_check
      _
    $region3: #{apply.1} parent=1 // pred_check_branch
      %12 = sbr.rel (0) target = $region5
    $region4: #{apply.1} parent=1 // pred_region
      _
    $region5: #{apply.1} parent=1 // pred_fallthru
      _
    // Predicated region
    $region6: #{apply.1} parent=1 // pred_check
      _
    $region7: #{apply.1} parent=1 // pred_check_branch
      %14 = sbr.rel (0) target = $region9
    $region8: #{apply.1} parent=1 // pred_region
      %s16 = ssub.s32 1024, 1024
      %17 = vsyncadd [#allocation3], %s16
      %s18 = sshll.u32 [#allocation2], 4
      %s19 = int_to_ptr.vmem [resolvable:$true] %s18
      %24 = dma.hbm_to_vmem [thread:$0]  %s1, 1024, %s19, [#allocation3], 64, 64, 4
    $region9: #{apply.1} parent=1 // pred_fallthru
      _
    // Predicated region
    $region10: #{apply.1} parent=1 // pred_check
      _
    $region11: #{apply.1} parent=1 // pred_check_branch
      %26 = sbr.rel (0) target = $region13
    $region12: #{apply.1} parent=1 // pred_region
      _
    $region13: #{apply.1} parent=1 // pred_fallthru
      _
    // Predicated region
    $region14: #{apply.1} parent=1 // pred_check
      _
    $region15: #{apply.1} parent=1 // pred_check_branch
      %28 = sbr.rel (0) target = $region17
    $region16: #{apply.1} parent=1 // pred_region
      _
    $region17: #{apply.1} parent=1 // pred_fallthru
      _
    // Predicated region
    $region18: #{apply.1} parent=1 // pred_check
      _
    $region19: #{apply.1} parent=1 // pred_check_branch
      %30 = sbr.rel (0) target = $region21
    $region20: #{apply.1} parent=1 // pred_region
      _
    $region21: #{apply.1} parent=1 // pred_fallthru
      _
    // Predicated region
    $region22: #{apply.1} parent=1 // pred_check
      _
    $region23: #{apply.1} parent=1 // pred_check_branch
      %32 = sbr.rel (0) target = $region25
    $region24: #{apply.1} parent=1 // pred_region
      %33 = dma.done [#allocation3], 1024
    $region25: #{apply.1} parent=1 // pred_fallthru
      _
    %p35 = scmp.eq.s32.totalorder 0, 0
    // Predicated region
    $region26: #{apply.1} parent=1 // pred_check
      %p36 = pneg %p35
    $region27: #{apply.1} parent=1 // pred_check_branch
      %38 = sbr.rel (%p36) target = $region29
    $region28: #{apply.1} parent=1 // pred_region
      %39 = vst [vmem:[%s5] sm:$0xff] 0.0
      %40 = vst [vmem:[%s5 + $0x8] sm:$0xff] 0.0
    $region29: #{apply.1} parent=1 // pred_fallthru
      _
    %v41 = vld [vmem:[%s0] sm:$0xf]
    %v42 = vld [vmem:[%s0 + $0x4] sm:$0xf]
    %v43 = vld [vmem:[#allocation2] sm:$0xf]
    %v44 = vld [vmem:[#allocation2 + $0x4] sm:$0xf]
    %v45 = vld [vmem:[#allocation2 + $0x8] sm:$0xf]
    %v46 = vld [vmem:[#allocation2 + $0xc] sm:$0xf]
    %v47 = vld [vmem:[#allocation2 + $0x10] sm:$0xf]
    %v48 = vld [vmem:[#allocation2 + $0x14] sm:$0xf]
    %v49 = vld [vmem:[#allocation2 + $0x18] sm:$0xf]
    %v50 = vld [vmem:[#allocation2 + $0x1c] sm:$0xf]
    %v51 = vld [vmem:[#allocation2 + $0x20] sm:$0xf]
    %v52 = vld [vmem:[#allocation2 + $0x24] sm:$0xf]
    %v53 = vld [vmem:[#allocation2 + $0x28] sm:$0xf]
    %v54 = vld [vmem:[#allocation2 + $0x2c] sm:$0xf]
    %v55 = vld [vmem:[#allocation2 + $0x30] sm:$0xf]
    %v56 = vld [vmem:[#allocation2 + $0x34] sm:$0xf]
    %v57 = vld [vmem:[#allocation2 + $0x38] sm:$0xf]
    %v58 = vld [vmem:[#allocation2 + $0x3c] sm:$0xf]
    %v59 = vld [vmem:[%s2] sm:$0x1]
    %v61 = vlaneseq
    %v62 = vshrl.u32 %v61, 7
    %v63 = vsub.s32 0, %v62
    %v64 = vrot.slane %v59, %v63
    %v68 = vunpack.c.l.b16 %v41
    %v69 = vunpack.c.l.b16 %v42
    %v70 = vpack.c.b16 %v69, %v68
    %v88 = vunpack.c.l.b16 %v43
    %v89 = vunpack.c.l.b16 %v44
    %v90 = vunpack.c.l.b16 %v45
    %v91 = vunpack.c.l.b16 %v46
    %v92 = vunpack.c.l.b16 %v47
    %v93 = vunpack.c.l.b16 %v48
    %v94 = vunpack.c.l.b16 %v49
    %v95 = vunpack.c.l.b16 %v50
    %v96 = vunpack.c.l.b16 %v51
    %v97 = vunpack.c.l.b16 %v52
    %v98 = vunpack.c.l.b16 %v53
    %v99 = vunpack.c.l.b16 %v54
    %v100 = vunpack.c.l.b16 %v55
    %v101 = vunpack.c.l.b16 %v56
    %v102 = vunpack.c.l.b16 %v57
    %v103 = vunpack.c.l.b16 %v58
    %v104 = vpack.c.b16 %v89, %v88
    %v105 = vpack.c.b16 %v91, %v90
    %v106 = vpack.c.b16 %v93, %v92
    %v107 = vpack.c.b16 %v95, %v94
    %v108 = vpack.c.b16 %v97, %v96
    %v109 = vpack.c.b16 %v99, %v98
    %v110 = vpack.c.b16 %v101, %v100
    %v111 = vpack.c.b16 %v103, %v102
    %120 = vmatprep.subr.bf16.mxu0 0
    %121 = vmatpush1.bf16.msra.mxu0 %v104
    %122 = vmatprep.subr.bf16.mxu0 0
    %123 = vmatpush1.bf16.msra.mxu0 %v105
    %124 = vmatprep.subr.bf16.mxu0 0
    %125 = vmatpush1.bf16.msra.mxu0 %v106
    %126 = vmatprep.subr.bf16.mxu0 0
    %127 = vmatpush1.bf16.msra.mxu0 %v107
    %128 = vmatprep.subr.bf16.mxu0 0
    %129 = vmatpush1.bf16.msra.mxu0 %v108
    %130 = vmatprep.subr.bf16.mxu0 0
    %131 = vmatpush1.bf16.msra.mxu0 %v109
    %132 = vmatprep.subr.bf16.mxu0 0
    %133 = vmatpush1.bf16.msra.mxu0 %v110
    %134 = vmatprep.subr.bf16.mxu0 0
    %135 = vmatpush1.bf16.msra.mxu0 %v111
    %136 = vmatprep.subr.bf16.mxu0 0
    %137 = vmatpush1.bf16.msra.mxu0 0
    %138 = vmatprep.subr.bf16.mxu0 0
    %139 = vmatpush1.bf16.msra.mxu0 0
    %140 = vmatprep.subr.bf16.mxu0 0
    %141 = vmatpush1.bf16.msra.mxu0 0
    %142 = vmatprep.subr.bf16.mxu0 0
    %143 = vmatpush1.bf16.msra.mxu0 0
    %144 = vmatprep.subr.bf16.mxu0 0
    %145 = vmatpush1.bf16.msra.mxu0 0
    %146 = vmatprep.subr.bf16.mxu0 0
    %147 = vmatpush1.bf16.msra.mxu0 0
    %148 = vmatprep.subr.bf16.mxu0 0
    %149 = vmatpush1.bf16.msra.mxu0 0
    %150 = vmatprep.subr.bf16.mxu0 0
    %151 = vmatpush1.bf16.msra.mxu0 0
    %152 = vmatprep.mubr.bf16.mxu0 0
    %153 = vmatmul.mubr.bf16.gmra.mrb[0].mxu0 %v70
    %v154 = vpop.f32.mrb[0].mxu0
    %v155 = vadd.f32 %v64, %v154
    %v156 = vpop.f32.mrb[0].mxu0
    %v157 = vpop.f32.mrb[0].mxu0
    %v158 = vadd.f32 %v64, %v157
    %v159 = vpop.f32.mrb[0].mxu0
    %160 = vdwg.mxu0
    %v161 = vmax.f32 %v155, 0.0
    %v162 = vmax.f32 %v158, 0.0
    %v163 = vpack.c.bf16 %v162, %v161
    %v164 = vld [vmem:[%s5] sm:$0xff]
    %v165 = vld [vmem:[%s5 + $0x8] sm:$0xff]
    %v166 = vld [vmem:[%s3] sm:$0xf]
    %v167 = vld [vmem:[%s3 + $0x4] sm:$0xf]
    %v168 = vld [vmem:[%s3 + $0x8] sm:$0xf]
    %v169 = vld [vmem:[%s3 + $0xc] sm:$0xf]
    %v170 = vld [vmem:[%s3 + $0x10] sm:$0xf]
    %v171 = vld [vmem:[%s3 + $0x14] sm:$0xf]
    %v172 = vld [vmem:[%s3 + $0x18] sm:$0xf]
    %v173 = vld [vmem:[%s3 + $0x1c] sm:$0xf]
    %v174 = vld [vmem:[%s3 + $0x20] sm:$0xf]
    %v175 = vld [vmem:[%s3 + $0x24] sm:$0xf]
    %v176 = vld [vmem:[%s3 + $0x28] sm:$0xf]
    %v177 = vld [vmem:[%s3 + $0x2c] sm:$0xf]
    %v178 = vld [vmem:[%s3 + $0x30] sm:$0xf]
    %v179 = vld [vmem:[%s3 + $0x34] sm:$0xf]
    %v180 = vld [vmem:[%s3 + $0x38] sm:$0xf]
    %v181 = vld [vmem:[%s3 + $0x3c] sm:$0xf]
    %v198 = vunpack.c.l.b16 %v166
    %v199 = vunpack.c.l.b16 %v167
    %v200 = vunpack.c.l.b16 %v168
    %v201 = vunpack.c.l.b16 %v169
    %v202 = vunpack.c.l.b16 %v170
    %v203 = vunpack.c.l.b16 %v171
    %v204 = vunpack.c.l.b16 %v172
    %v205 = vunpack.c.l.b16 %v173
    %v206 = vunpack.c.l.b16 %v174
    %v207 = vunpack.c.l.b16 %v175
    %v208 = vunpack.c.l.b16 %v176
    %v209 = vunpack.c.l.b16 %v177
    %v210 = vunpack.c.l.b16 %v178
    %v211 = vunpack.c.l.b16 %v179
    %v212 = vunpack.c.l.b16 %v180
    %v213 = vunpack.c.l.b16 %v181
    %v214 = vpack.c.b16 %v199, %v198
    %v215 = vpack.c.b16 %v201, %v200
    %v216 = vpack.c.b16 %v203, %v202
    %v217 = vpack.c.b16 %v205, %v204
    %v218 = vpack.c.b16 %v207, %v206
    %v219 = vpack.c.b16 %v209, %v208
    %v220 = vpack.c.b16 %v211, %v210
    %v221 = vpack.c.b16 %v213, %v212
    %230 = vmatprep.subr.bf16.mxu0 0
    %231 = vmatpush1.bf16.msra.mxu0 %v214
    %232 = vmatprep.subr.bf16.mxu0 0
    %233 = vmatpush1.bf16.msra.mxu0 %v215
    %234 = vmatprep.subr.bf16.mxu0 0
    %235 = vmatpush1.bf16.msra.mxu0 %v216
    %236 = vmatprep.subr.bf16.mxu0 0
    %237 = vmatpush1.bf16.msra.mxu0 %v217
    %238 = vmatprep.subr.bf16.mxu0 0
    %239 = vmatpush1.bf16.msra.mxu0 %v218
    %240 = vmatprep.subr.bf16.mxu0 0
    %241 = vmatpush1.bf16.msra.mxu0 %v219
    %242 = vmatprep.subr.bf16.mxu0 0
    %243 = vmatpush1.bf16.msra.mxu0 %v220
    %244 = vmatprep.subr.bf16.mxu0 0
    %245 = vmatpush1.bf16.msra.mxu0 %v221
    %246 = vmatprep.subr.bf16.mxu0 0
    %247 = vmatpush1.bf16.msra.mxu0 0
    %248 = vmatprep.subr.bf16.mxu0 0
    %249 = vmatpush1.bf16.msra.mxu0 0
    %250 = vmatprep.subr.bf16.mxu0 0
    %251 = vmatpush1.bf16.msra.mxu0 0
    %252 = vmatprep.subr.bf16.mxu0 0
    %253 = vmatpush1.bf16.msra.mxu0 0
    %254 = vmatprep.subr.bf16.mxu0 0
    %255 = vmatpush1.bf16.msra.mxu0 0
    %256 = vmatprep.subr.bf16.mxu0 0
    %257 = vmatpush1.bf16.msra.mxu0 0
    %258 = vmatprep.subr.bf16.mxu0 0
    %259 = vmatpush1.bf16.msra.mxu0 0
    %260 = vmatprep.subr.bf16.mxu0 0
    %261 = vmatpush1.bf16.msra.mxu0 0
    %262 = vmatprep.mubr.bf16.mxu0 0
    %263 = vmatmul.mubr.bf16.gmra.mrb[0].mxu0 %v163
    %v264 = vpop.f32.mrb[0].mxu0
    %v265 = vadd.f32 0.0, %v264
    %v266 = vpop.f32.mrb[0].mxu0
    %v267 = vpop.f32.mrb[0].mxu0
    %v268 = vadd.f32 0.0, %v267
    %v269 = vpop.f32.mrb[0].mxu0
    %270 = vdwg.mxu0
    %v271 = vadd.f32 %v164, %v265
    %v272 = vadd.f32 %v165, %v268
    %273 = vst [vmem:[%s5] sm:$0xff] %v271
    %274 = vst [vmem:[%s5 + $0x8] sm:$0xff] %v272
    // Predicated region
    $region30: #{apply.1} parent=1 // pred_check
      %p275 = pneg %p35
    $region31: #{apply.1} parent=1 // pred_check_branch
      %277 = sbr.rel (%p275) target = $region33
    $region32: #{apply.1} parent=1 // pred_region
      %v278 = vld [vmem:[%s5] sm:$0xff]
      %v279 = vld [vmem:[%s5 + $0x8] sm:$0xff]
      %v280 = vld [vmem:[%s4] sm:$0x1]
      %v282 = vlaneseq
      %v283 = vshrl.u32 %v282, 7
      %v284 = vsub.s32 0, %v283
      %v285 = vrot.slane %v280, %v284
      %v287 = vadd.f32 %v278, %v285
      %v288 = vadd.f32 %v279, %v285
      %289 = vst [vmem:[%s5] sm:$0xff] %v287
      %290 = vst [vmem:[%s5 + $0x8] sm:$0xff] %v288
    $region33: #{apply.1} parent=1 // pred_fallthru
      _
    // Predicated region
    $region34: #{apply.1} parent=1 // pred_check
      _
    $region35: #{apply.1} parent=1 // pred_check_branch
      %292 = sbr.rel (0) target = $region37
    $region36: #{apply.1} parent=1 // pred_region
      _
    $region37: #{apply.1} parent=1 // pred_fallthru
      _
    // Predicated region
    $region38: #{apply.1} parent=1 // pred_check
      _
    $region39: #{apply.1} parent=1 // pred_check_branch
      %294 = sbr.rel (0) target = $region41
    $region40: #{apply.1} parent=1 // pred_region
      _
    $region41: #{apply.1} parent=1 // pred_fallthru
      _
    %295 = vsyncpa [#allocation3], 1

</llo_original>
